<compile_context>
chip_gen: v7x
topology: tpu7x:2x2x1
jax: 0.10.0
libtpu: 0.0.40
codegen_flags: <defaults>
</compile_context>

<pallas_src>
import functools

import jax
import jax.numpy as jnp
from jax.experimental import pallas as pl
from jax.experimental.pallas import tpu as pltpu


def _upsample_nearest_kernel(x_ref, o_ref, *, scale: int):
    """Upsample BC channel planes by integer `scale` (nearest neighbor).

    x_ref: (BC, TH, W)          VMEM tile (NCHW planes, possibly H-tiled)
    o_ref: (BC, TH, scale*Wo)   VMEM tile; row h is `scale` lane-concatenated copies
                                of the W-repeated input row h (row-major view of the
                                (BC, TH*scale, Wo) output slab).
    """
    bc, th, w = x_ref.shape
    wo = w * scale

    x = x_ref[...]                                                   # (BC, TH, W)

    # Stage 1: W-repeat -- the single accepted lane interleave for NCHW.
    z = jnp.broadcast_to(x[:, :, :, None], (bc, th, w, scale))
    z = z.reshape(bc, th, wo)                                        # (BC, TH, Wo)

    # Stage 2: H-repeat as a lane-concat (minor dim only; no sublane->lane merge).
    # Row-major check: flat = h*(scale*Wo) + i*Wo + wo == (h*scale + i)*Wo + wo.
    o_ref[...] = jnp.concatenate([z] * scale, axis=-1)               # (BC, TH, scale*Wo)


def _round_up(x: int, m: int) -> int:
    return ((x + m - 1) // m) * m


def _vmem_capacity_bytes() -> int:
    """Physical VMEM per TensorCore (64 MiB on v7x, 128 MiB on v5e/v6e)."""
    try:
        cap = getattr(pltpu.get_tpu_info(), "vmem_capacity_bytes", None)
        if cap:
            return int(cap)
    except Exception:
        pass
    return 64 * 1024 * 1024  # conservative default (v7x per-TC)


def upsample_nearest(x: jax.Array, scale_factor) -> jax.Array:
    """Equivalent of F.interpolate(x, scale_factor=scale_factor, mode='nearest')
    for NCHW input and positive integer scale_factor."""
    scale = int(scale_factor)
    if scale != scale_factor or scale < 1:
        raise ValueError("only positive integer scale_factor is supported")
    if scale == 1:
        return x

    N, C, H, W = x.shape
    Ho, Wo = H * scale, W * scale
    NC = N * C
    itemsize = jnp.dtype(x.dtype).itemsize

    # ---- dtype- and generation-aware tile sizing ------------------------------
    LANE = 128
    sub = {4: 8, 2: 16, 1: 32}.get(itemsize, 8)       # packed sublane count

    vmem_cap = _vmem_capacity_bytes()
    # ~24 MiB working set on 64 MiB parts (v7x), ~48 MiB on 128 MiB parts (v5e/v6e).
    budget = (3 * vmem_cap) // 8

    in_row_bytes = _round_up(W, LANE) * itemsize
    out_row_bytes = _round_up(scale * Wo, LANE) * itemsize

    def footprint(bc: int, th: int) -> int:
        rows = _round_up(th, sub)
        return 2 * bc * rows * (in_row_bytes + out_row_bytes)   # x2: double buffering

    per_plane = footprint(1, H)

    MIN_STEPS = 4  # keep >=4 grid steps when possible: megacore sharding + pipelining
    if per_plane <= budget:
        TH = H
        bc_budget = max(budget // per_plane, 1)
        bc_cap = max(pl.cdiv(NC, MIN_STEPS), 1)
        BC = int(max(1, min(bc_budget, bc_cap, NC)))
    else:
        # Single plane exceeds the budget (large early-layer maps): tile H instead of
        # forcing an oversized channel block.  TH is a multiple of the packed sublane
        # count, so the block shape stays legal.
        BC = 1
        group = footprint(1, sub)
        n_groups = max(budget // group, 1)
        TH = int(min(n_groups * sub, _round_up(H, sub)))
        if TH >= H:
            TH = H

    fp = footprint(BC, TH)
    # Clamp to physical capacity (never footprint+slack beyond what the chip has).
    vmem_limit = int(min(vmem_cap, max(32 * 1024 * 1024, fp + (4 << 20))))

    # Free, row-major views (no data movement).
    x3 = x.reshape(NC, H, W)
    grid = (pl.cdiv(NC, BC), pl.cdiv(H, TH))   # ragged last blocks are safe: pure
                                               # per-element map, padding discarded.

    out_view = pl.pallas_call(
        functools.partial(_upsample_nearest_kernel, scale=scale),
        out_shape=jax.ShapeDtypeStruct((NC, H, scale * Wo), x.dtype),
        grid=grid,
        in_specs=[pl.BlockSpec((BC, TH, W), lambda i, j: (i, j, 0))],
        out_specs=pl.BlockSpec((BC, TH, scale * Wo), lambda i, j: (i, j, 0)),
        compiler_params=pltpu.CompilerParams(
            dimension_semantics=("parallel", "parallel"),
            vmem_limit_bytes=vmem_limit,
        ),
    )(x3)

    return out_view.reshape(N, C, Ho, Wo)


if __name__ == "__main__":
    key = jax.random.PRNGKey(0)

    # Small NCHW input consistent with the module's forward: batch=2, channels=4, 16x16.
    x = jax.random.normal(key, (2, 4, 16, 16), dtype=jnp.float32)
    scale_factor = 2  # YOLO uses Upsample(scale_factor=2, mode='nearest')

    out = upsample_nearest(x, scale_factor)
    out = jax.block_until_ready(out)

    ref = jnp.repeat(jnp.repeat(x, scale_factor, axis=2), scale_factor, axis=3)
    assert out.shape == (2, 4, 32, 32)
    assert out.dtype == x.dtype
    assert jnp.array_equal(out, ref)

    # Second check: odd spatial size, scale=3, ragged channel-block grid.
    key2 = jax.random.PRNGKey(1)
    x2 = jax.random.normal(key2, (1, 5, 7, 9), dtype=jnp.float32)
    out2 = jax.block_until_ready(upsample_nearest(x2, 3))
    ref2 = jnp.repeat(jnp.repeat(x2, 3, axis=2), 3, axis=3)
    assert out2.shape == (1, 5, 21, 27)
    assert jnp.array_equal(out2, ref2)

    print("KERNEL_OK")
</pallas_src>

<mosaic_0001>
module attributes {stable_mosaic.version = 11 : i64} {
  func.func @_upsample_nearest_kernel(%arg0: i32, %arg1: i32, %arg2: memref<2x16x16xf32, #tpu.memory_space<vmem>>, %arg3: memref<2x16x64xf32, #tpu.memory_space<vmem>>) attributes {dimension_semantics = [#tpu.dimension_semantics<parallel>, #tpu.dimension_semantics<parallel>], iteration_bounds = array<i64: 4, 1>, scalar_prefetch = 0 : i64, scratch_operands = 0 : i64, tpu.core_type = #tpu.core_type<tc>, window_params = [{transform_indices = @transform_0, window_bounds = array<i64: 2, 16, 16>}, {transform_indices = @transform_1, window_bounds = array<i64: 2, 16, 64>}]} {
    %c0 = arith.constant 0 : index
    %c0_0 = arith.constant 0 : index
    %c0_1 = arith.constant 0 : index
    %0 = vector.load %arg2[%c0, %c0_0, %c0_1] : memref<2x16x16xf32, #tpu.memory_space<vmem>>, vector<2x16x16xf32>
    %1 = vector.shape_cast %0 : vector<2x16x16xf32> to vector<2x16x16x1xf32>
    %2 = vector.shape_cast %1 : vector<2x16x16x1xf32> to vector<2x16x16x1xf32>
    %3 = vector.broadcast %2 : vector<2x16x16x1xf32> to vector<2x16x16x2xf32>
    %4 = vector.shape_cast %3 : vector<2x16x16x2xf32> to vector<2x16x32xf32>
    %5 = tpu.concatenate %4, %4 in 2 : vector<2x16x32xf32>, vector<2x16x32xf32> -> vector<2x16x64xf32>
    %c0_2 = arith.constant 0 : index
    %c0_3 = arith.constant 0 : index
    %c0_4 = arith.constant 0 : index
    %6 = vector.load %arg3[%c0_2, %c0_3, %c0_4] : memref<2x16x64xf32, #tpu.memory_space<vmem>>, vector<2x16x64xf32>
    tpu.vector_store %arg3[%c0_2, %c0_3, %c0_4], %5 {strides = array<i32>} : memref<2x16x64xf32, #tpu.memory_space<vmem>>, vector<2x16x64xf32>,
    return
  }
  func.func @transform_0(%arg0: i32, %arg1: i32) -> (i32, i32, i32) {
    %c0_i32 = arith.constant 0 : i32
    %c0_i32_0 = arith.constant 0 : i32
    return %arg0, %arg1, %c0_i32 : i32, i32, i32
  }
  func.func @transform_1(%arg0: i32, %arg1: i32) -> (i32, i32, i32) {
    %c0_i32 = arith.constant 0 : i32
    %c0_i32_0 = arith.constant 0 : i32
    return %arg0, %arg1, %c0_i32 : i32, i32, i32
  }
}

</mosaic_0001>

<llo_original>
// kernel: tpu_custom_call.1
$region0: #{tpu_custom_call.1}
  #allocation0 [shape = 'u32[]', space=smem, size = 0x4, offset = 0x4, fixed_abs, tag = 'smem constant byte address 0x4 - core index']
  #allocation1 [shape = 'u32[144,128]{1,0:T(1,128)}', space=vmem, size = 0x12000, scoped, tag = 'internal scratch']
  %s0 = inlined_call_operand.hbm [shape: f32[8,16,16], index: 0, kind: input, shape index: {}]
  %s1 = inlined_call_operand.hbm [shape: f32[8,16,64], index: 1, kind: output, shape index: {}]
  %s2 = sld [smem:[#allocation0]]
  $region41: #{tpu_custom_call.1} parent=0
    _
  %s4 = ssub.s32 1, %s2
  %s5 = scalar_select 0, %s4, %s2
  $region1: #{tpu_custom_call.1} parent=0
    #allocation2 [shape = 'u8[32768]{0}', space=vmem, size = 0x8000, scoped, tag = 'input window, operand 0']
    #allocation3 [shape = 's32[2]{0}', space=sflag, size = 0x8, scoped, tag = 'scoped memory for tpu_custom_call.1']
    #allocation4 [shape = 's32[2]{0}', space=sflag, size = 0x8, scoped, tag = 'scoped memory for tpu_custom_call.1']
    #allocation5 [shape = 'u8[32768]{0}', space=vmem, size = 0x8000, scoped, tag = 'output window, operand 0']
    %6 = vsyncpa [#allocation3], 0
    %s7 = scalar_lea.sflag [#allocation3], 1
    %8 = vsyncpa %s7, 0
    %9 = vsyncpa [#allocation4], 0
    %s10 = scalar_lea.sflag [#allocation4], 1
    %11 = vsyncpa %s10, 0
    loop: start=0, step=1, limit=6
    $region2: #{tpu_custom_call.1} parent=1 // loop_pre_header
      _
    $region3: #{tpu_custom_call.1} parent=1 // loop_header
      %s13 = sphi 0, %s17
      %p14 = scmp.ge.s32.totalorder %s13, 6
      %s20 = sphi 0, %s32
      %s21 = sphi 0, %s28
      %s22 = sphi 0, %s20
      %s23 = sphi 0, %s21
      %s24 = sphi 0, %s22
      %s25 = sphi 0, %s23
      %s37 = sphi 0, %s39
      %s40 = sphi 0, %s37
      %s41 = sphi 0, %s40
      %s57 = sphi 0, %s41
      %s65 = sphi 0, %s67
      %s68 = sphi 0, %s65
      %s69 = sphi 0, %s68
      %s85 = sphi 0, %s69
    $region4: #{tpu_custom_call.1} parent=1 // loop_header_branch
      %16 = sbr.rel (%p14) target = $region8
    $region5: #{tpu_custom_call.1} parent=1 // loop_body
      %s18 = ssub.s32 %s13, 1
      %s19 = ssub.s32 %s13, 2
      %s26 = sadd.s32 1, %s21
      %p27 = scmp.ge.s32.totalorder %s26, 1
      %s28 = scalar_select %p27, 0, %s26
      %s29 = sadd.s32 1, %s20
      %s30 = scalar_select %p27, %s29, %s20
      %p31 = scmp.ge.s32.totalorder %s30, 4
      %s32 = scalar_select %p31, 0, %s30
      %s33 = ssub.s32 %s20, %s32
      %s34 = ssub.s32 %s21, %s28
      %s35 = sor.u32 %s33, %s34
      %p36 = scmp.eq.s32.totalorder %s35, 0
      %s38 = sadd.s32 %s37, 1
      %s39 = scalar_select %p36, %s37, %s38
      %p42 = pneg %p36
      %p43 = scmp.eq.s32.totalorder %s13, 3
      %p44 = por %p42, %p43
      %p45 = scmp.ne.s32.totalorder %s37, %s40
      %p46 = scmp.eq.s32.totalorder %s13, 0
      %p47 = por %p45, %p46
      %p48 = scmp.ne.s32.totalorder %s37, %s40
      %p49 = scmp.eq.s32.totalorder %s18, 3
      %p50 = por %p48, %p49
      %p51 = scmp.ne.s32.totalorder %s40, %s41
      %p52 = scmp.eq.s32.totalorder %s18, 0
      %p53 = por %p51, %p52
      %p54 = scmp.ne.s32.totalorder %s40, %s41
      %p55 = scmp.eq.s32.totalorder %s19, 3
      %p56 = por %p54, %p55
      %p58 = scmp.ne.s32.totalorder %s41, %s57
      %p59 = scmp.eq.s32.totalorder %s19, 0
      %p60 = por %p58, %p59
      %s61 = ssub.s32 %s20, %s32
      %s62 = ssub.s32 %s21, %s28
      %s63 = sor.u32 %s61, %s62
      %p64 = scmp.eq.s32.totalorder %s63, 0
      %s66 = sadd.s32 %s65, 1
      %s67 = scalar_select %p64, %s65, %s66
      %p70 = pneg %p64
      %p71 = scmp.eq.s32.totalorder %s13, 3
      %p72 = por %p70, %p71
      %p73 = scmp.ne.s32.totalorder %s65, %s68
      %p74 = scmp.eq.s32.totalorder %s13, 0
      %p75 = por %p73, %p74
      %p76 = scmp.ne.s32.totalorder %s65, %s68
      %p77 = scmp.eq.s32.totalorder %s18, 3
      %p78 = por %p76, %p77
      %p79 = scmp.ne.s32.totalorder %s68, %s69
      %p80 = scmp.eq.s32.totalorder %s18, 0
      %p81 = por %p79, %p80
      %p82 = scmp.ne.s32.totalorder %s68, %s69
      %p83 = scmp.eq.s32.totalorder %s19, 3
      %p84 = por %p82, %p83
      %p86 = scmp.ne.s32.totalorder %s69, %s85
      %p87 = scmp.eq.s32.totalorder %s19, 0
      %p88 = por %p86, %p87
      %p89 = scmp.le.s32.totalorder 1, %s13
      %p90 = scmp.lt.s32.totalorder %s13, 5
      %p91 = pnand %p89, %p90
      %p92 = pneg %p91
      // Predicated region
      $region9: #{tpu_custom_call.1} parent=5 // pred_check
        _
      $region10: #{tpu_custom_call.1} parent=5 // pred_check_branch
        %94 = sbr.rel (%p91) target = $region12
      $region11: #{tpu_custom_call.1} parent=5 // pred_region
        %s95 = ssub.s32 %s13, 1
      $region12: #{tpu_custom_call.1} parent=5 // pred_fallthru
        _
      %p96 = scmp.lt.s32.totalorder %s13, 4
      // Predicated region
      $region13: #{tpu_custom_call.1} parent=5 // pred_check
        %p97 = pneg %p96
      $region14: #{tpu_custom_call.1} parent=5 // pred_check_branch
        %99 = sbr.rel (%p97) target = $region16
      $region15: #{tpu_custom_call.1} parent=5 // pred_region
        // Predicated region
        $region17: #{tpu_custom_call.1} parent=15 // pred_check
          %p100 = pneg %p47
        $region18: #{tpu_custom_call.1} parent=15 // pred_check_branch
          %102 = sbr.rel (%p100) target = $region20
        $region19: #{tpu_custom_call.1} parent=15 // pred_region
          %s103 = sand.u32 %s37, 1
          %s104 = scalar_lea.sflag [#allocation3], %s103
          %s105 = sand.u32 %s37, 1
          %s106 = smul.addr %s105, 32
          %s107 = scalar_lea.vmem [#allocation2], %s106
          %s108 = smul.u32 2, %s20
          %s109 = smul.u32 2, %s21
          %s111 = ssub.s32 512, 512
          %112 = vsyncadd %s104, %s111
          %s113 = smul.addr %s108, 2
          %s114 = sadd.s32 %s109, %s113
          %s115 = smul.addr %s114, 128
          %s116 = scalar_lea.hbm %s0, %s115
          %s117 = sshll.u32 %s107, 4
          %s118 = int_to_ptr.vmem [resolvable:$true] %s117
          %123 = dma.hbm_to_vmem [thread:$0]  %s116, 512, %s118, %s104, 128, 128, 8
        $region20: #{tpu_custom_call.1} parent=15 // pred_fallthru
          _
      $region16: #{tpu_custom_call.1} parent=5 // pred_fallthru
        _
      %p124 = scmp.le.s32.totalorder 1, %s13
      %p125 = scmp.lt.s32.totalorder %s13, 5
      %p126 = pnand %p124, %p125
      %p127 = pneg %p126
      // Predicated region
      $region21: #{tpu_custom_call.1} parent=5 // pred_check
        _
      $region22: #{tpu_custom_call.1} parent=5 // pred_check_branch
        %129 = sbr.rel (%p126) target = $region24
      $region23: #{tpu_custom_call.1} parent=5 // pred_region
        %s130 = ssub.s32 %s13, 1
        %s131 = sand.u32 %s40, 1
        %s132 = scalar_lea.sflag [#allocation3], %s131
        %s133 = sand.u32 %s40, 1
        %s134 = smul.addr %s133, 32
        %s135 = scalar_lea.vmem [#allocation2], %s134
        // Predicated region
        $region25: #{tpu_custom_call.1} parent=23 // pred_check
          %p136 = pneg %p53
        $region26: #{tpu_custom_call.1} parent=23 // pred_check_branch
          %138 = sbr.rel (%p136) target = $region28
        $region27: #{tpu_custom_call.1} parent=23 // pred_region
          %139 = dma.done %s132, 512
        $region28: #{tpu_custom_call.1} parent=23 // pred_fallthru
          _
        %s140 = sand.u32 %s40, 1
        %s141 = scalar_lea.sflag [#allocation3], %s140
        %s142 = sand.u32 %s40, 1
        %s143 = smul.addr %s142, 32
        %s144 = scalar_lea.vmem [#allocation2], %s143
        %p145 = pneg %p53
        %p146 = pneg %p50
        %p147 = pneg %p81
        %p148 = pneg %p78
        %s149 = sand.u32 %s68, 1
        %s150 = scalar_lea.sflag [#allocation4], %s149
        %s151 = sand.u32 %s68, 1
        %s152 = smul.addr %s151, 32
        %s153 = scalar_lea.vmem [#allocation5], %s152
        %s154 = smul.u32 2, %s22
        %s155 = smul.u32 2, %s23
        %s156 = smul.u32 2, %s22
        %s157 = smul.u32 2, %s23
        %v158 = vld [vmem:[%s135] sm:$0xff]
        %v159 = vld [vmem:[%s135 + $0x8] sm:$0xff]
        %v160 = vld [vmem:[%s135 + $0x10] sm:$0xff]
        %v161 = vld [vmem:[%s135 + $0x18] sm:$0xff]
        %v162 = vlaneseq
        %v163 = vshrl.u32 %v162, 7
        %v164 = vsub.s32 0, %v163
        %v165 = vrot.slane %v158, %v164
        %167 = vbcast.lane.b32.xlu0 %v165, 256
        %v168 = vpop.permute.xlu0 %167
        %s170 = sor.u32 256, 8
        %171 = vbcast.lane.b32.xlu0 %v165, %s170
        %v172 = vpop.permute.xlu0 %171
        %v173 = vlaneseq
        %v174 = vshrl.u32 %v173, 7
        %v175 = vsub.s32 1, %v174
        %v176 = vrot.slane %v158, %v175
        %178 = vbcast.lane.b32.xlu0 %v176, 256
        %v179 = vpop.permute.xlu0 %178
        %s181 = sor.u32 256, 8
        %182 = vbcast.lane.b32.xlu0 %v176, %s181
        %v183 = vpop.permute.xlu0 %182
        %v184 = vlaneseq
        %v185 = vshrl.u32 %v184, 7
        %v186 = vsub.s32 2, %v185
        %v187 = vrot.slane %v158, %v186
        %189 = vbcast.lane.b32.xlu0 %v187, 256
        %v190 = vpop.permute.xlu0 %189
        %s192 = sor.u32 256, 8
        %193 = vbcast.lane.b32.xlu0 %v187, %s192
        %v194 = vpop.permute.xlu0 %193
        %v195 = vlaneseq
        %v196 = vshrl.u32 %v195, 7
        %v197 = vsub.s32 3, %v196
        %v198 = vrot.slane %v158, %v197
        %200 = vbcast.lane.b32.xlu0 %v198, 256
        %v201 = vpop.permute.xlu0 %200
        %s203 = sor.u32 256, 8
        %204 = vbcast.lane.b32.xlu0 %v198, %s203
        %v205 = vpop.permute.xlu0 %204
        %v206 = vlaneseq
        %v207 = vshrl.u32 %v206, 7
        %v208 = vsub.s32 4, %v207
        %v209 = vrot.slane %v158, %v208
        %211 = vbcast.lane.b32.xlu0 %v209, 256
        %v212 = vpop.permute.xlu0 %211
        %s214 = sor.u32 256, 8
        %215 = vbcast.lane.b32.xlu0 %v209, %s214
        %v216 = vpop.permute.xlu0 %215
        %v217 = vlaneseq
        %v218 = vshrl.u32 %v217, 7
        %v219 = vsub.s32 5, %v218
        %v220 = vrot.slane %v158, %v219
        %222 = vbcast.lane.b32.xlu0 %v220, 256
        %v223 = vpop.permute.xlu0 %222
        %s225 = sor.u32 256, 8
        %226 = vbcast.lane.b32.xlu0 %v220, %s225
        %v227 = vpop.permute.xlu0 %226
        %v228 = vlaneseq
        %v229 = vshrl.u32 %v228, 7
        %v230 = vsub.s32 6, %v229
        %v231 = vrot.slane %v158, %v230
        %233 = vbcast.lane.b32.xlu0 %v231, 256
        %v234 = vpop.permute.xlu0 %233
        %s236 = sor.u32 256, 8
        %237 = vbcast.lane.b32.xlu0 %v231, %s236
        %v238 = vpop.permute.xlu0 %237
        %v239 = vlaneseq
        %v240 = vshrl.u32 %v239, 7
        %v241 = vsub.s32 7, %v240
        %v242 = vrot.slane %v158, %v241
        %244 = vbcast.lane.b32.xlu0 %v242, 256
        %v245 = vpop.permute.xlu0 %244
        %s247 = sor.u32 256, 8
        %248 = vbcast.lane.b32.xlu0 %v242, %s247
        %v249 = vpop.permute.xlu0 %248
        %v250 = vlaneseq
        %v251 = vshrl.u32 %v250, 7
        %v252 = vsub.s32 0, %v251
        %v253 = vrot.slane %v159, %v252
        %255 = vbcast.lane.b32.xlu0 %v253, 256
        %v256 = vpop.permute.xlu0 %255
        %s258 = sor.u32 256, 8
        %259 = vbcast.lane.b32.xlu0 %v253, %s258
        %v260 = vpop.permute.xlu0 %259
        %v261 = vlaneseq
        %v262 = vshrl.u32 %v261, 7
        %v263 = vsub.s32 1, %v262
        %v264 = vrot.slane %v159, %v263
        %266 = vbcast.lane.b32.xlu0 %v264, 256
        %v267 = vpop.permute.xlu0 %266
        %s269 = sor.u32 256, 8
        %270 = vbcast.lane.b32.xlu0 %v264, %s269
        %v271 = vpop.permute.xlu0 %270
        %v272 = vlaneseq
        %v273 = vshrl.u32 %v272, 7
        %v274 = vsub.s32 2, %v273
        %v275 = vrot.slane %v159, %v274
        %277 = vbcast.lane.b32.xlu0 %v275, 256
        %v278 = vpop.permute.xlu0 %277
        %s280 = sor.u32 256, 8
        %281 = vbcast.lane.b32.xlu0 %v275, %s280
        %v282 = vpop.permute.xlu0 %281
        %v283 = vlaneseq
        %v284 = vshrl.u32 %v283, 7
        %v285 = vsub.s32 3, %v284
        %v286 = vrot.slane %v159, %v285
        %288 = vbcast.lane.b32.xlu0 %v286, 256
        %v289 = vpop.permute.xlu0 %288
        %s291 = sor.u32 256, 8
        %292 = vbcast.lane.b32.xlu0 %v286, %s291
        %v293 = vpop.permute.xlu0 %292
        %v294 = vlaneseq
        %v295 = vshrl.u32 %v294, 7
        %v296 = vsub.s32 4, %v295
        %v297 = vrot.slane %v159, %v296
        %299 = vbcast.lane.b32.xlu0 %v297, 256
        %v300 = vpop.permute.xlu0 %299
        %s302 = sor.u32 256, 8
        %303 = vbcast.lane.b32.xlu0 %v297, %s302
        %v304 = vpop.permute.xlu0 %303
        %v305 = vlaneseq
        %v306 = vshrl.u32 %v305, 7
        %v307 = vsub.s32 5, %v306
        %v308 = vrot.slane %v159, %v307
        %310 = vbcast.lane.b32.xlu0 %v308, 256
        %v311 = vpop.permute.xlu0 %310
        %s313 = sor.u32 256, 8
        %314 = vbcast.lane.b32.xlu0 %v308, %s313
        %v315 = vpop.permute.xlu0 %314
        %v316 = vlaneseq
        %v317 = vshrl.u32 %v316, 7
        %v318 = vsub.s32 6, %v317
        %v319 = vrot.slane %v159, %v318
        %321 = vbcast.lane.b32.xlu0 %v319, 256
        %v322 = vpop.permute.xlu0 %321
        %s324 = sor.u32 256, 8
        %325 = vbcast.lane.b32.xlu0 %v319, %s324
        %v326 = vpop.permute.xlu0 %325
        %v327 = vlaneseq
        %v328 = vshrl.u32 %v327, 7
        %v329 = vsub.s32 7, %v328
        %v330 = vrot.slane %v159, %v329
        %332 = vbcast.lane.b32.xlu0 %v330, 256
        %v333 = vpop.permute.xlu0 %332
        %s335 = sor.u32 256, 8
        %336 = vbcast.lane.b32.xlu0 %v330, %s335
        %v337 = vpop.permute.xlu0 %336
        %v338 = vlaneseq
        %v339 = vshrl.u32 %v338, 7
        %v340 = vsub.s32 0, %v339
        %v341 = vrot.slane %v160, %v340
        %343 = vbcast.lane.b32.xlu0 %v341, 256
        %v344 = vpop.permute.xlu0 %343
        %s346 = sor.u32 256, 8
        %347 = vbcast.lane.b32.xlu0 %v341, %s346
        %v348 = vpop.permute.xlu0 %347
        %v349 = vlaneseq
        %v350 = vshrl.u32 %v349, 7
        %v351 = vsub.s32 1, %v350
        %v352 = vrot.slane %v160, %v351
        %354 = vbcast.lane.b32.xlu0 %v352, 256
        %v355 = vpop.permute.xlu0 %354
        %s357 = sor.u32 256, 8
        %358 = vbcast.lane.b32.xlu0 %v352, %s357
        %v359 = vpop.permute.xlu0 %358
        %v360 = vlaneseq
        %v361 = vshrl.u32 %v360, 7
        %v362 = vsub.s32 2, %v361
        %v363 = vrot.slane %v160, %v362
        %365 = vbcast.lane.b32.xlu0 %v363, 256
        %v366 = vpop.permute.xlu0 %365
        %s368 = sor.u32 256, 8
        %369 = vbcast.lane.b32.xlu0 %v363, %s368
        %v370 = vpop.permute.xlu0 %369
        %v371 = vlaneseq
        %v372 = vshrl.u32 %v371, 7
        %v373 = vsub.s32 3, %v372
        %v374 = vrot.slane %v160, %v373
        %376 = vbcast.lane.b32.xlu0 %v374, 256
        %v377 = vpop.permute.xlu0 %376
        %s379 = sor.u32 256, 8
        %380 = vbcast.lane.b32.xlu0 %v374, %s379
        %v381 = vpop.permute.xlu0 %380
        %v382 = vlaneseq
        %v383 = vshrl.u32 %v382, 7
        %v384 = vsub.s32 4, %v383
        %v385 = vrot.slane %v160, %v384
        %387 = vbcast.lane.b32.xlu0 %v385, 256
        %v388 = vpop.permute.xlu0 %387
        %s390 = sor.u32 256, 8
        %391 = vbcast.lane.b32.xlu0 %v385, %s390
        %v392 = vpop.permute.xlu0 %391
        %v393 = vlaneseq
        %v394 = vshrl.u32 %v393, 7
        %v395 = vsub.s32 5, %v394
        %v396 = vrot.slane %v160, %v395
        %398 = vbcast.lane.b32.xlu0 %v396, 256
        %v399 = vpop.permute.xlu0 %398
        %s401 = sor.u32 256, 8
        %402 = vbcast.lane.b32.xlu0 %v396, %s401
        %v403 = vpop.permute.xlu0 %402
        %v404 = vlaneseq
        %v405 = vshrl.u32 %v404, 7
        %v406 = vsub.s32 6, %v405
        %v407 = vrot.slane %v160, %v406
        %409 = vbcast.lane.b32.xlu0 %v407, 256
        %v410 = vpop.permute.xlu0 %409
        %s412 = sor.u32 256, 8
        %413 = vbcast.lane.b32.xlu0 %v407, %s412
        %v414 = vpop.permute.xlu0 %413
        %v415 = vlaneseq
        %v416 = vshrl.u32 %v415, 7
        %v417 = vsub.s32 7, %v416
        %v418 = vrot.slane %v160, %v417
        %420 = vbcast.lane.b32.xlu0 %v418, 256
        %v421 = vpop.permute.xlu0 %420
        %s423 = sor.u32 256, 8
        %424 = vbcast.lane.b32.xlu0 %v418, %s423
        %v425 = vpop.permute.xlu0 %424
        %v426 = vlaneseq
        %v427 = vshrl.u32 %v426, 7
        %v428 = vsub.s32 0, %v427
        %v429 = vrot.slane %v161, %v428
        %431 = vbcast.lane.b32.xlu0 %v429, 256
        %v432 = vpop.permute.xlu0 %431
        %s434 = sor.u32 256, 8
        %435 = vbcast.lane.b32.xlu0 %v429, %s434
        %v436 = vpop.permute.xlu0 %435
        %v437 = vlaneseq
        %v438 = vshrl.u32 %v437, 7
        %v439 = vsub.s32 1, %v438
        %v440 = vrot.slane %v161, %v439
        %442 = vbcast.lane.b32.xlu0 %v440, 256
        %v443 = vpop.permute.xlu0 %442
        %s445 = sor.u32 256, 8
        %446 = vbcast.lane.b32.xlu0 %v440, %s445
        %v447 = vpop.permute.xlu0 %446
        %v448 = vlaneseq
        %v449 = vshrl.u32 %v448, 7
        %v450 = vsub.s32 2, %v449
        %v451 = vrot.slane %v161, %v450
        %453 = vbcast.lane.b32.xlu0 %v451, 256
        %v454 = vpop.permute.xlu0 %453
        %s456 = sor.u32 256, 8
        %457 = vbcast.lane.b32.xlu0 %v451, %s456
        %v458 = vpop.permute.xlu0 %457
        %v459 = vlaneseq
        %v460 = vshrl.u32 %v459, 7
        %v461 = vsub.s32 3, %v460
        %v462 = vrot.slane %v161, %v461
        %464 = vbcast.lane.b32.xlu0 %v462, 256
        %v465 = vpop.permute.xlu0 %464
        %s467 = sor.u32 256, 8
        %468 = vbcast.lane.b32.xlu0 %v462, %s467
        %v469 = vpop.permute.xlu0 %468
        %v470 = vlaneseq
        %v471 = vshrl.u32 %v470, 7
        %v472 = vsub.s32 4, %v471
        %v473 = vrot.slane %v161, %v472
        %475 = vbcast.lane.b32.xlu0 %v473, 256
        %v476 = vpop.permute.xlu0 %475
        %s478 = sor.u32 256, 8
        %479 = vbcast.lane.b32.xlu0 %v473, %s478
        %v480 = vpop.permute.xlu0 %479
        %v481 = vlaneseq
        %v482 = vshrl.u32 %v481, 7
        %v483 = vsub.s32 5, %v482
        %v484 = vrot.slane %v161, %v483
        %486 = vbcast.lane.b32.xlu0 %v484, 256
        %v487 = vpop.permute.xlu0 %486
        %s489 = sor.u32 256, 8
        %490 = vbcast.lane.b32.xlu0 %v484, %s489
        %v491 = vpop.permute.xlu0 %490
        %v492 = vlaneseq
        %v493 = vshrl.u32 %v492, 7
        %v494 = vsub.s32 6, %v493
        %v495 = vrot.slane %v161, %v494
        %497 = vbcast.lane.b32.xlu0 %v495, 256
        %v498 = vpop.permute.xlu0 %497
        %s500 = sor.u32 256, 8
        %501 = vbcast.lane.b32.xlu0 %v495, %s500
        %v502 = vpop.permute.xlu0 %501
        %v503 = vlaneseq
        %v504 = vshrl.u32 %v503, 7
        %v505 = vsub.s32 7, %v504
        %v506 = vrot.slane %v161, %v505
        %508 = vbcast.lane.b32.xlu0 %v506, 256
        %v509 = vpop.permute.xlu0 %508
        %s511 = sor.u32 256, 8
        %512 = vbcast.lane.b32.xlu0 %v506, %s511
        %v513 = vpop.permute.xlu0 %512
        %v514 = vcombine.low %v168, %v190
        %v515 = vcombine.high %v168, %v190
        %v517 = vunpack.c.l.s4 1983009808
        %v518 = vunpack.c.0.s8 %v517
        %v519 = vlaneseq
        %v520 = vshrl.u32 %v519, 7
        %v521 = vsub.s32 %v518, %v520
        %v522 = vrot.slane %v514, %v521
        %v524 = vunpack.c.l.s4 1983009808
        %v525 = vunpack.c.0.s8 %v524
        %v526 = vlaneseq
        %v527 = vshrl.u32 %v526, 7
        %v528 = vsub.s32 %v525, %v527
        %v529 = vrot.slane %v515, %v528
        %v530 = vcombine.low %v179, %v201
        %v531 = vcombine.high %v179, %v201
        %v533 = vunpack.c.l.s4 1983009808
        %v534 = vunpack.c.0.s8 %v533
        %v535 = vlaneseq
        %v536 = vshrl.u32 %v535, 7
        %v537 = vsub.s32 %v534, %v536
        %v538 = vrot.slane %v530, %v537
        %v540 = vunpack.c.l.s4 1983009808
        %v541 = vunpack.c.0.s8 %v540
        %v542 = vlaneseq
        %v543 = vshrl.u32 %v542, 7
        %v544 = vsub.s32 %v541, %v543
        %v545 = vrot.slane %v531, %v544
        %v546 = vcombine.low %v212, %v234
        %v547 = vcombine.high %v212, %v234
        %v549 = vunpack.c.l.s4 1983009808
        %v550 = vunpack.c.0.s8 %v549
        %v551 = vlaneseq
        %v552 = vshrl.u32 %v551, 7
        %v553 = vsub.s32 %v550, %v552
        %v554 = vrot.slane %v546, %v553
        %v556 = vunpack.c.l.s4 1983009808
        %v557 = vunpack.c.0.s8 %v556
        %v558 = vlaneseq
        %v559 = vshrl.u32 %v558, 7
        %v560 = vsub.s32 %v557, %v559
        %v561 = vrot.slane %v547, %v560
        %v562 = vcombine.low %v223, %v245
        %v563 = vcombine.high %v223, %v245
        %v565 = vunpack.c.l.s4 1983009808
        %v566 = vunpack.c.0.s8 %v565
        %v567 = vlaneseq
        %v568 = vshrl.u32 %v567, 7
        %v569 = vsub.s32 %v566, %v568
        %v570 = vrot.slane %v562, %v569
        %v572 = vunpack.c.l.s4 1983009808
        %v573 = vunpack.c.0.s8 %v572
        %v574 = vlaneseq
        %v575 = vshrl.u32 %v574, 7
        %v576 = vsub.s32 %v573, %v575
        %v577 = vrot.slane %v563, %v576
        %v578 = vcombine.low %v522, %v538
        %v579 = vcombine.high %v522, %v538
        %v581 = vunpack.c.l.s4 1934713408
        %v582 = vunpack.c.0.s8 %v581
        %v583 = vlaneseq
        %v584 = vshrl.u32 %v583, 7
        %v585 = vsub.s32 %v582, %v584
        %v586 = vrot.slane %v578, %v585
        %v588 = vunpack.c.l.s4 1934713408
        %v589 = vunpack.c.0.s8 %v588
        %v590 = vlaneseq
        %v591 = vshrl.u32 %v590, 7
        %v592 = vsub.s32 %v589, %v591
        %v593 = vrot.slane %v579, %v592
        %v594 = vcombine.low %v529, %v545
        %v595 = vcombine.high %v529, %v545
        %v597 = vunpack.c.l.s4 1934713408
        %v598 = vunpack.c.0.s8 %v597
        %v599 = vlaneseq
        %v600 = vshrl.u32 %v599, 7
        %v601 = vsub.s32 %v598, %v600
        %v602 = vrot.slane %v594, %v601
        %v604 = vunpack.c.l.s4 1934713408
        %v605 = vunpack.c.0.s8 %v604
        %v606 = vlaneseq
        %v607 = vshrl.u32 %v606, 7
        %v608 = vsub.s32 %v605, %v607
        %v609 = vrot.slane %v595, %v608
        %v610 = vcombine.low %v554, %v570
        %v611 = vcombine.high %v554, %v570
        %v613 = vunpack.c.l.s4 1934713408
        %v614 = vunpack.c.0.s8 %v613
        %v615 = vlaneseq
        %v616 = vshrl.u32 %v615, 7
        %v617 = vsub.s32 %v614, %v616
        %v618 = vrot.slane %v610, %v617
        %v620 = vunpack.c.l.s4 1934713408
        %v621 = vunpack.c.0.s8 %v620
        %v622 = vlaneseq
        %v623 = vshrl.u32 %v622, 7
        %v624 = vsub.s32 %v621, %v623
        %v625 = vrot.slane %v611, %v624
        %v626 = vcombine.low %v561, %v577
        %v627 = vcombine.high %v561, %v577
        %v629 = vunpack.c.l.s4 1934713408
        %v630 = vunpack.c.0.s8 %v629
        %v631 = vlaneseq
        %v632 = vshrl.u32 %v631, 7
        %v633 = vsub.s32 %v630, %v632
        %v634 = vrot.slane %v626, %v633
        %v636 = vunpack.c.l.s4 1934713408
        %v637 = vunpack.c.0.s8 %v636
        %v638 = vlaneseq
        %v639 = vshrl.u32 %v638, 7
        %v640 = vsub.s32 %v637, %v639
        %v641 = vrot.slane %v627, %v640
        %v642 = vcombine.low %v586, %v618
        %v643 = vcombine.high %v586, %v618
        %v644 = vcombine.low %v593, %v625
        %v645 = vcombine.high %v593, %v625
        %v646 = vcombine.low %v602, %v634
        %v647 = vcombine.high %v602, %v634
        %v648 = vcombine.low %v609, %v641
        %v649 = vcombine.high %v609, %v641
        %v650 = vcombine.low %v256, %v278
        %v651 = vcombine.high %v256, %v278
        %v653 = vunpack.c.l.s4 1983009808
        %v654 = vunpack.c.0.s8 %v653
        %v655 = vlaneseq
        %v656 = vshrl.u32 %v655, 7
        %v657 = vsub.s32 %v654, %v656
        %v658 = vrot.slane %v650, %v657
        %v660 = vunpack.c.l.s4 1983009808
        %v661 = vunpack.c.0.s8 %v660
        %v662 = vlaneseq
        %v663 = vshrl.u32 %v662, 7
        %v664 = vsub.s32 %v661, %v663
        %v665 = vrot.slane %v651, %v664
        %v666 = vcombine.low %v267, %v289
        %v667 = vcombine.high %v267, %v289
        %v669 = vunpack.c.l.s4 1983009808
        %v670 = vunpack.c.0.s8 %v669
        %v671 = vlaneseq
        %v672 = vshrl.u32 %v671, 7
        %v673 = vsub.s32 %v670, %v672
        %v674 = vrot.slane %v666, %v673
        %v676 = vunpack.c.l.s4 1983009808
        %v677 = vunpack.c.0.s8 %v676
        %v678 = vlaneseq
        %v679 = vshrl.u32 %v678, 7
        %v680 = vsub.s32 %v677, %v679
        %v681 = vrot.slane %v667, %v680
        %v682 = vcombine.low %v300, %v322
        %v683 = vcombine.high %v300, %v322
        %v685 = vunpack.c.l.s4 1983009808
        %v686 = vunpack.c.0.s8 %v685
        %v687 = vlaneseq
        %v688 = vshrl.u32 %v687, 7
        %v689 = vsub.s32 %v686, %v688
        %v690 = vrot.slane %v682, %v689
        %v692 = vunpack.c.l.s4 1983009808
        %v693 = vunpack.c.0.s8 %v692
        %v694 = vlaneseq
        %v695 = vshrl.u32 %v694, 7
        %v696 = vsub.s32 %v693, %v695
        %v697 = vrot.slane %v683, %v696
        %v698 = vcombine.low %v311, %v333
        %v699 = vcombine.high %v311, %v333
        %v701 = vunpack.c.l.s4 1983009808
        %v702 = vunpack.c.0.s8 %v701
        %v703 = vlaneseq
        %v704 = vshrl.u32 %v703, 7
        %v705 = vsub.s32 %v702, %v704
        %v706 = vrot.slane %v698, %v705
        %v708 = vunpack.c.l.s4 1983009808
        %v709 = vunpack.c.0.s8 %v708
        %v710 = vlaneseq
        %v711 = vshrl.u32 %v710, 7
        %v712 = vsub.s32 %v709, %v711
        %v713 = vrot.slane %v699, %v712
        %v714 = vcombine.low %v658, %v674
        %v715 = vcombine.high %v658, %v674
        %v717 = vunpack.c.l.s4 1934713408
        %v718 = vunpack.c.0.s8 %v717
        %v719 = vlaneseq
        %v720 = vshrl.u32 %v719, 7
        %v721 = vsub.s32 %v718, %v720
        %v722 = vrot.slane %v714, %v721
        %v724 = vunpack.c.l.s4 1934713408
        %v725 = vunpack.c.0.s8 %v724
        %v726 = vlaneseq
        %v727 = vshrl.u32 %v726, 7
        %v728 = vsub.s32 %v725, %v727
        %v729 = vrot.slane %v715, %v728
        %v730 = vcombine.low %v665, %v681
        %v731 = vcombine.high %v665, %v681
        %v733 = vunpack.c.l.s4 1934713408
        %v734 = vunpack.c.0.s8 %v733
        %v735 = vlaneseq
        %v736 = vshrl.u32 %v735, 7
        %v737 = vsub.s32 %v734, %v736
        %v738 = vrot.slane %v730, %v737
        %v740 = vunpack.c.l.s4 1934713408
        %v741 = vunpack.c.0.s8 %v740
        %v742 = vlaneseq
        %v743 = vshrl.u32 %v742, 7
        %v744 = vsub.s32 %v741, %v743
        %v745 = vrot.slane %v731, %v744
        %v746 = vcombine.low %v690, %v706
        %v747 = vcombine.high %v690, %v706
        %v749 = vunpack.c.l.s4 1934713408
        %v750 = vunpack.c.0.s8 %v749
        %v751 = vlaneseq
        %v752 = vshrl.u32 %v751, 7
        %v753 = vsub.s32 %v750, %v752
        %v754 = vrot.slane %v746, %v753
        %v756 = vunpack.c.l.s4 1934713408
        %v757 = vunpack.c.0.s8 %v756
        %v758 = vlaneseq
        %v759 = vshrl.u32 %v758, 7
        %v760 = vsub.s32 %v757, %v759
        %v761 = vrot.slane %v747, %v760
        %v762 = vcombine.low %v697, %v713
        %v763 = vcombine.high %v697, %v713
        %v765 = vunpack.c.l.s4 1934713408
        %v766 = vunpack.c.0.s8 %v765
        %v767 = vlaneseq
        %v768 = vshrl.u32 %v767, 7
        %v769 = vsub.s32 %v766, %v768
        %v770 = vrot.slane %v762, %v769
        %v772 = vunpack.c.l.s4 1934713408
        %v773 = vunpack.c.0.s8 %v772
        %v774 = vlaneseq
        %v775 = vshrl.u32 %v774, 7
        %v776 = vsub.s32 %v773, %v775
        %v777 = vrot.slane %v763, %v776
        %v778 = vcombine.low %v722, %v754
        %v779 = vcombine.high %v722, %v754
        %v780 = vcombine.low %v729, %v761
        %v781 = vcombine.high %v729, %v761
        %v782 = vcombine.low %v738, %v770
        %v783 = vcombine.high %v738, %v770
        %v784 = vcombine.low %v745, %v777
        %v785 = vcombine.high %v745, %v777
        %v786 = vcombine.low %v172, %v194
        %v787 = vcombine.high %v172, %v194
        %v789 = vunpack.c.l.s4 1983009808
        %v790 = vunpack.c.0.s8 %v789
        %v791 = vlaneseq
        %v792 = vshrl.u32 %v791, 7
        %v793 = vsub.s32 %v790, %v792
        %v794 = vrot.slane %v786, %v793
        %v796 = vunpack.c.l.s4 1983009808
        %v797 = vunpack.c.0.s8 %v796
        %v798 = vlaneseq
        %v799 = vshrl.u32 %v798, 7
        %v800 = vsub.s32 %v797, %v799
        %v801 = vrot.slane %v787, %v800
        %v802 = vcombine.low %v183, %v205
        %v803 = vcombine.high %v183, %v205
        %v805 = vunpack.c.l.s4 1983009808
        %v806 = vunpack.c.0.s8 %v805
        %v807 = vlaneseq
        %v808 = vshrl.u32 %v807, 7
        %v809 = vsub.s32 %v806, %v808
        %v810 = vrot.slane %v802, %v809
        %v812 = vunpack.c.l.s4 1983009808
        %v813 = vunpack.c.0.s8 %v812
        %v814 = vlaneseq
        %v815 = vshrl.u32 %v814, 7
        %v816 = vsub.s32 %v813, %v815
        %v817 = vrot.slane %v803, %v816
        %v818 = vcombine.low %v216, %v238
        %v819 = vcombine.high %v216, %v238
        %v821 = vunpack.c.l.s4 1983009808
        %v822 = vunpack.c.0.s8 %v821
        %v823 = vlaneseq
        %v824 = vshrl.u32 %v823, 7
        %v825 = vsub.s32 %v822, %v824
        %v826 = vrot.slane %v818, %v825
        %v828 = vunpack.c.l.s4 1983009808
        %v829 = vunpack.c.0.s8 %v828
        %v830 = vlaneseq
        %v831 = vshrl.u32 %v830, 7
        %v832 = vsub.s32 %v829, %v831
        %v833 = vrot.slane %v819, %v832
        %v834 = vcombine.low %v227, %v249
        %v835 = vcombine.high %v227, %v249
        %v837 = vunpack.c.l.s4 1983009808
        %v838 = vunpack.c.0.s8 %v837
        %v839 = vlaneseq
        %v840 = vshrl.u32 %v839, 7
        %v841 = vsub.s32 %v838, %v840
        %v842 = vrot.slane %v834, %v841
        %v844 = vunpack.c.l.s4 1983009808
        %v845 = vunpack.c.0.s8 %v844
        %v846 = vlaneseq
        %v847 = vshrl.u32 %v846, 7
        %v848 = vsub.s32 %v845, %v847
        %v849 = vrot.slane %v835, %v848
        %v850 = vcombine.low %v794, %v810
        %v851 = vcombine.high %v794, %v810
        %v853 = vunpack.c.l.s4 1934713408
        %v854 = vunpack.c.0.s8 %v853
        %v855 = vlaneseq
        %v856 = vshrl.u32 %v855, 7
        %v857 = vsub.s32 %v854, %v856
        %v858 = vrot.slane %v850, %v857
        %v860 = vunpack.c.l.s4 1934713408
        %v861 = vunpack.c.0.s8 %v860
        %v862 = vlaneseq
        %v863 = vshrl.u32 %v862, 7
        %v864 = vsub.s32 %v861, %v863
        %v865 = vrot.slane %v851, %v864
        %v866 = vcombine.low %v801, %v817
        %v867 = vcombine.high %v801, %v817
        %v869 = vunpack.c.l.s4 1934713408
        %v870 = vunpack.c.0.s8 %v869
        %v871 = vlaneseq
        %v872 = vshrl.u32 %v871, 7
        %v873 = vsub.s32 %v870, %v872
        %v874 = vrot.slane %v866, %v873
        %v876 = vunpack.c.l.s4 1934713408
        %v877 = vunpack.c.0.s8 %v876
        %v878 = vlaneseq
        %v879 = vshrl.u32 %v878, 7
        %v880 = vsub.s32 %v877, %v879
        %v881 = vrot.slane %v867, %v880
        %v882 = vcombine.low %v826, %v842
        %v883 = vcombine.high %v826, %v842
        %v885 = vunpack.c.l.s4 1934713408
        %v886 = vunpack.c.0.s8 %v885
        %v887 = vlaneseq
        %v888 = vshrl.u32 %v887, 7
        %v889 = vsub.s32 %v886, %v888
        %v890 = vrot.slane %v882, %v889
        %v892 = vunpack.c.l.s4 1934713408
        %v893 = vunpack.c.0.s8 %v892
        %v894 = vlaneseq
        %v895 = vshrl.u32 %v894, 7
        %v896 = vsub.s32 %v893, %v895
        %v897 = vrot.slane %v883, %v896
        %v898 = vcombine.low %v833, %v849
        %v899 = vcombine.high %v833, %v849
        %v901 = vunpack.c.l.s4 1934713408
        %v902 = vunpack.c.0.s8 %v901
        %v903 = vlaneseq
        %v904 = vshrl.u32 %v903, 7
        %v905 = vsub.s32 %v902, %v904
        %v906 = vrot.slane %v898, %v905
        %v908 = vunpack.c.l.s4 1934713408
        %v909 = vunpack.c.0.s8 %v908
        %v910 = vlaneseq
        %v911 = vshrl.u32 %v910, 7
        %v912 = vsub.s32 %v909, %v911
        %v913 = vrot.slane %v899, %v912
        %v914 = vcombine.low %v858, %v890
        %v915 = vcombine.high %v858, %v890
        %v916 = vcombine.low %v865, %v897
        %v917 = vcombine.high %v865, %v897
        %v918 = vcombine.low %v874, %v906
        %v919 = vcombine.high %v874, %v906
        %v920 = vcombine.low %v881, %v913
        %v921 = vcombine.high %v881, %v913
        %v922 = vcombine.low %v260, %v282
        %v923 = vcombine.high %v260, %v282
        %v925 = vunpack.c.l.s4 1983009808
        %v926 = vunpack.c.0.s8 %v925
        %v927 = vlaneseq
        %v928 = vshrl.u32 %v927, 7
        %v929 = vsub.s32 %v926, %v928
        %v930 = vrot.slane %v922, %v929
        %v932 = vunpack.c.l.s4 1983009808
        %v933 = vunpack.c.0.s8 %v932
        %v934 = vlaneseq
        %v935 = vshrl.u32 %v934, 7
        %v936 = vsub.s32 %v933, %v935
        %v937 = vrot.slane %v923, %v936
        %v938 = vcombine.low %v271, %v293
        %v939 = vcombine.high %v271, %v293
        %v941 = vunpack.c.l.s4 1983009808
        %v942 = vunpack.c.0.s8 %v941
        %v943 = vlaneseq
        %v944 = vshrl.u32 %v943, 7
        %v945 = vsub.s32 %v942, %v944
        %v946 = vrot.slane %v938, %v945
        %v948 = vunpack.c.l.s4 1983009808
        %v949 = vunpack.c.0.s8 %v948
        %v950 = vlaneseq
        %v951 = vshrl.u32 %v950, 7
        %v952 = vsub.s32 %v949, %v951
        %v953 = vrot.slane %v939, %v952
        %v954 = vcombine.low %v304, %v326
        %v955 = vcombine.high %v304, %v326
        %v957 = vunpack.c.l.s4 1983009808
        %v958 = vunpack.c.0.s8 %v957
        %v959 = vlaneseq
        %v960 = vshrl.u32 %v959, 7
        %v961 = vsub.s32 %v958, %v960
        %v962 = vrot.slane %v954, %v961
        %v964 = vunpack.c.l.s4 1983009808
        %v965 = vunpack.c.0.s8 %v964
        %v966 = vlaneseq
        %v967 = vshrl.u32 %v966, 7
        %v968 = vsub.s32 %v965, %v967
        %v969 = vrot.slane %v955, %v968
        %v970 = vcombine.low %v315, %v337
        %v971 = vcombine.high %v315, %v337
        %v973 = vunpack.c.l.s4 1983009808
        %v974 = vunpack.c.0.s8 %v973
        %v975 = vlaneseq
        %v976 = vshrl.u32 %v975, 7
        %v977 = vsub.s32 %v974, %v976
        %v978 = vrot.slane %v970, %v977
        %v980 = vunpack.c.l.s4 1983009808
        %v981 = vunpack.c.0.s8 %v980
        %v982 = vlaneseq
        %v983 = vshrl.u32 %v982, 7
        %v984 = vsub.s32 %v981, %v983
        %v985 = vrot.slane %v971, %v984
        %v986 = vcombine.low %v930, %v946
        %v987 = vcombine.high %v930, %v946
        %v989 = vunpack.c.l.s4 1934713408
        %v990 = vunpack.c.0.s8 %v989
        %v991 = vlaneseq
        %v992 = vshrl.u32 %v991, 7
        %v993 = vsub.s32 %v990, %v992
        %v994 = vrot.slane %v986, %v993
        %v996 = vunpack.c.l.s4 1934713408
        %v997 = vunpack.c.0.s8 %v996
        %v998 = vlaneseq
        %v999 = vshrl.u32 %v998, 7
        %v1000 = vsub.s32 %v997, %v999
        %v1001 = vrot.slane %v987, %v1000
        %v1002 = vcombine.low %v937, %v953
        %v1003 = vcombine.high %v937, %v953
        %v1005 = vunpack.c.l.s4 1934713408
        %v1006 = vunpack.c.0.s8 %v1005
        %v1007 = vlaneseq
        %v1008 = vshrl.u32 %v1007, 7
        %v1009 = vsub.s32 %v1006, %v1008
        %v1010 = vrot.slane %v1002, %v1009
        %v1012 = vunpack.c.l.s4 1934713408
        %v1013 = vunpack.c.0.s8 %v1012
        %v1014 = vlaneseq
        %v1015 = vshrl.u32 %v1014, 7
        %v1016 = vsub.s32 %v1013, %v1015
        %v1017 = vrot.slane %v1003, %v1016
        %v1018 = vcombine.low %v962, %v978
        %v1019 = vcombine.high %v962, %v978
        %v1021 = vunpack.c.l.s4 1934713408
        %v1022 = vunpack.c.0.s8 %v1021
        %v1023 = vlaneseq
        %v1024 = vshrl.u32 %v1023, 7
        %v1025 = vsub.s32 %v1022, %v1024
        %v1026 = vrot.slane %v1018, %v1025
        %v1028 = vunpack.c.l.s4 1934713408
        %v1029 = vunpack.c.0.s8 %v1028
        %v1030 = vlaneseq
        %v1031 = vshrl.u32 %v1030, 7
        %v1032 = vsub.s32 %v1029, %v1031
        %v1033 = vrot.slane %v1019, %v1032
        %v1034 = vcombine.low %v969, %v985
        %v1035 = vcombine.high %v969, %v985
        %v1037 = vunpack.c.l.s4 1934713408
        %v1038 = vunpack.c.0.s8 %v1037
        %v1039 = vlaneseq
        %v1040 = vshrl.u32 %v1039, 7
        %v1041 = vsub.s32 %v1038, %v1040
        %v1042 = vrot.slane %v1034, %v1041
        %v1044 = vunpack.c.l.s4 1934713408
        %v1045 = vunpack.c.0.s8 %v1044
        %v1046 = vlaneseq
        %v1047 = vshrl.u32 %v1046, 7
        %v1048 = vsub.s32 %v1045, %v1047
        %v1049 = vrot.slane %v1035, %v1048
        %v1050 = vcombine.low %v994, %v1026
        %v1051 = vcombine.high %v994, %v1026
        %v1052 = vcombine.low %v1001, %v1033
        %v1053 = vcombine.high %v1001, %v1033
        %v1054 = vcombine.low %v1010, %v1042
        %v1055 = vcombine.high %v1010, %v1042
        %v1056 = vcombine.low %v1017, %v1049
        %v1057 = vcombine.high %v1017, %v1049
        %v1058 = vcombine.low %v344, %v366
        %v1059 = vcombine.high %v344, %v366
        %v1061 = vunpack.c.l.s4 1983009808
        %v1062 = vunpack.c.0.s8 %v1061
        %v1063 = vlaneseq
        %v1064 = vshrl.u32 %v1063, 7
        %v1065 = vsub.s32 %v1062, %v1064
        %v1066 = vrot.slane %v1058, %v1065
        %v1068 = vunpack.c.l.s4 1983009808
        %v1069 = vunpack.c.0.s8 %v1068
        %v1070 = vlaneseq
        %v1071 = vshrl.u32 %v1070, 7
        %v1072 = vsub.s32 %v1069, %v1071
        %v1073 = vrot.slane %v1059, %v1072
        %v1074 = vcombine.low %v355, %v377
        %v1075 = vcombine.high %v355, %v377
        %v1077 = vunpack.c.l.s4 1983009808
        %v1078 = vunpack.c.0.s8 %v1077
        %v1079 = vlaneseq
        %v1080 = vshrl.u32 %v1079, 7
        %v1081 = vsub.s32 %v1078, %v1080
        %v1082 = vrot.slane %v1074, %v1081
        %v1084 = vunpack.c.l.s4 1983009808
        %v1085 = vunpack.c.0.s8 %v1084
        %v1086 = vlaneseq
        %v1087 = vshrl.u32 %v1086, 7
        %v1088 = vsub.s32 %v1085, %v1087
        %v1089 = vrot.slane %v1075, %v1088
        %v1090 = vcombine.low %v388, %v410
        %v1091 = vcombine.high %v388, %v410
        %v1093 = vunpack.c.l.s4 1983009808
        %v1094 = vunpack.c.0.s8 %v1093
        %v1095 = vlaneseq
        %v1096 = vshrl.u32 %v1095, 7
        %v1097 = vsub.s32 %v1094, %v1096
        %v1098 = vrot.slane %v1090, %v1097
        %v1100 = vunpack.c.l.s4 1983009808
        %v1101 = vunpack.c.0.s8 %v1100
        %v1102 = vlaneseq
        %v1103 = vshrl.u32 %v1102, 7
        %v1104 = vsub.s32 %v1101, %v1103
        %v1105 = vrot.slane %v1091, %v1104
        %v1106 = vcombine.low %v399, %v421
        %v1107 = vcombine.high %v399, %v421
        %v1109 = vunpack.c.l.s4 1983009808
        %v1110 = vunpack.c.0.s8 %v1109
        %v1111 = vlaneseq
        %v1112 = vshrl.u32 %v1111, 7
        %v1113 = vsub.s32 %v1110, %v1112
        %v1114 = vrot.slane %v1106, %v1113
        %v1116 = vunpack.c.l.s4 1983009808
        %v1117 = vunpack.c.0.s8 %v1116
        %v1118 = vlaneseq
        %v1119 = vshrl.u32 %v1118, 7
        %v1120 = vsub.s32 %v1117, %v1119
        %v1121 = vrot.slane %v1107, %v1120
        %v1122 = vcombine.low %v1066, %v1082
        %v1123 = vcombine.high %v1066, %v1082
        %v1125 = vunpack.c.l.s4 1934713408
        %v1126 = vunpack.c.0.s8 %v1125
        %v1127 = vlaneseq
        %v1128 = vshrl.u32 %v1127, 7
        %v1129 = vsub.s32 %v1126, %v1128
        %v1130 = vrot.slane %v1122, %v1129
        %v1132 = vunpack.c.l.s4 1934713408
        %v1133 = vunpack.c.0.s8 %v1132
        %v1134 = vlaneseq
        %v1135 = vshrl.u32 %v1134, 7
        %v1136 = vsub.s32 %v1133, %v1135
        %v1137 = vrot.slane %v1123, %v1136
        %v1138 = vcombine.low %v1073, %v1089
        %v1139 = vcombine.high %v1073, %v1089
        %v1141 = vunpack.c.l.s4 1934713408
        %v1142 = vunpack.c.0.s8 %v1141
        %v1143 = vlaneseq
        %v1144 = vshrl.u32 %v1143, 7
        %v1145 = vsub.s32 %v1142, %v1144
        %v1146 = vrot.slane %v1138, %v1145
        %v1148 = vunpack.c.l.s4 1934713408
        %v1149 = vunpack.c.0.s8 %v1148
        %v1150 = vlaneseq
        %v1151 = vshrl.u32 %v1150, 7
        %v1152 = vsub.s32 %v1149, %v1151
        %v1153 = vrot.slane %v1139, %v1152
        %v1154 = vcombine.low %v1098, %v1114
        %v1155 = vcombine.high %v1098, %v1114
        %v1157 = vunpack.c.l.s4 1934713408
        %v1158 = vunpack.c.0.s8 %v1157
        %v1159 = vlaneseq
        %v1160 = vshrl.u32 %v1159, 7
        %v1161 = vsub.s32 %v1158, %v1160
        %v1162 = vrot.slane %v1154, %v1161
        %v1164 = vunpack.c.l.s4 1934713408
        %v1165 = vunpack.c.0.s8 %v1164
        %v1166 = vlaneseq
        %v1167 = vshrl.u32 %v1166, 7
        %v1168 = vsub.s32 %v1165, %v1167
        %v1169 = vrot.slane %v1155, %v1168
        %v1170 = vcombine.low %v1105, %v1121
        %v1171 = vcombine.high %v1105, %v1121
        %v1173 = vunpack.c.l.s4 1934713408
        %v1174 = vunpack.c.0.s8 %v1173
        %v1175 = vlaneseq
        %v1176 = vshrl.u32 %v1175, 7
        %v1177 = vsub.s32 %v1174, %v1176
        %v1178 = vrot.slane %v1170, %v1177
        %v1180 = vunpack.c.l.s4 1934713408
        %v1181 = vunpack.c.0.s8 %v1180
        %v1182 = vlaneseq
        %v1183 = vshrl.u32 %v1182, 7
        %v1184 = vsub.s32 %v1181, %v1183
        %v1185 = vrot.slane %v1171, %v1184
        %v1186 = vcombine.low %v1130, %v1162
        %v1187 = vcombine.high %v1130, %v1162
        %v1188 = vcombine.low %v1137, %v1169
        %v1189 = vcombine.high %v1137, %v1169
        %v1190 = vcombine.low %v1146, %v1178
        %v1191 = vcombine.high %v1146, %v1178
        %v1192 = vcombine.low %v1153, %v1185
        %v1193 = vcombine.high %v1153, %v1185
        %v1194 = vcombine.low %v432, %v454
        %v1195 = vcombine.high %v432, %v454
        %v1197 = vunpack.c.l.s4 1983009808
        %v1198 = vunpack.c.0.s8 %v1197
        %v1199 = vlaneseq
        %v1200 = vshrl.u32 %v1199, 7
        %v1201 = vsub.s32 %v1198, %v1200
        %v1202 = vrot.slane %v1194, %v1201
        %v1204 = vunpack.c.l.s4 1983009808
        %v1205 = vunpack.c.0.s8 %v1204
        %v1206 = vlaneseq
        %v1207 = vshrl.u32 %v1206, 7
        %v1208 = vsub.s32 %v1205, %v1207
        %v1209 = vrot.slane %v1195, %v1208
        %v1210 = vcombine.low %v443, %v465
        %v1211 = vcombine.high %v443, %v465
        %v1213 = vunpack.c.l.s4 1983009808
        %v1214 = vunpack.c.0.s8 %v1213
        %v1215 = vlaneseq
        %v1216 = vshrl.u32 %v1215, 7
        %v1217 = vsub.s32 %v1214, %v1216
        %v1218 = vrot.slane %v1210, %v1217
        %v1220 = vunpack.c.l.s4 1983009808
        %v1221 = vunpack.c.0.s8 %v1220
        %v1222 = vlaneseq
        %v1223 = vshrl.u32 %v1222, 7
        %v1224 = vsub.s32 %v1221, %v1223
        %v1225 = vrot.slane %v1211, %v1224
        %v1226 = vcombine.low %v476, %v498
        %v1227 = vcombine.high %v476, %v498
        %v1229 = vunpack.c.l.s4 1983009808
        %v1230 = vunpack.c.0.s8 %v1229
        %v1231 = vlaneseq
        %v1232 = vshrl.u32 %v1231, 7
        %v1233 = vsub.s32 %v1230, %v1232
        %v1234 = vrot.slane %v1226, %v1233
        %v1236 = vunpack.c.l.s4 1983009808
        %v1237 = vunpack.c.0.s8 %v1236
        %v1238 = vlaneseq
        %v1239 = vshrl.u32 %v1238, 7
        %v1240 = vsub.s32 %v1237, %v1239
        %v1241 = vrot.slane %v1227, %v1240
        %v1242 = vcombine.low %v487, %v509
        %v1243 = vcombine.high %v487, %v509
        %v1245 = vunpack.c.l.s4 1983009808
        %v1246 = vunpack.c.0.s8 %v1245
        %v1247 = vlaneseq
        %v1248 = vshrl.u32 %v1247, 7
        %v1249 = vsub.s32 %v1246, %v1248
        %v1250 = vrot.slane %v1242, %v1249
        %v1252 = vunpack.c.l.s4 1983009808
        %v1253 = vunpack.c.0.s8 %v1252
        %v1254 = vlaneseq
        %v1255 = vshrl.u32 %v1254, 7
        %v1256 = vsub.s32 %v1253, %v1255
        %v1257 = vrot.slane %v1243, %v1256
        %v1258 = vcombine.low %v1202, %v1218
        %v1259 = vcombine.high %v1202, %v1218
        %v1261 = vunpack.c.l.s4 1934713408
        %v1262 = vunpack.c.0.s8 %v1261
        %v1263 = vlaneseq
        %v1264 = vshrl.u32 %v1263, 7
        %v1265 = vsub.s32 %v1262, %v1264
        %v1266 = vrot.slane %v1258, %v1265
        %v1268 = vunpack.c.l.s4 1934713408
        %v1269 = vunpack.c.0.s8 %v1268
        %v1270 = vlaneseq
        %v1271 = vshrl.u32 %v1270, 7
        %v1272 = vsub.s32 %v1269, %v1271
        %v1273 = vrot.slane %v1259, %v1272
        %v1274 = vcombine.low %v1209, %v1225
        %v1275 = vcombine.high %v1209, %v1225
        %v1277 = vunpack.c.l.s4 1934713408
        %v1278 = vunpack.c.0.s8 %v1277
        %v1279 = vlaneseq
        %v1280 = vshrl.u32 %v1279, 7
        %v1281 = vsub.s32 %v1278, %v1280
        %v1282 = vrot.slane %v1274, %v1281
        %v1284 = vunpack.c.l.s4 1934713408
        %v1285 = vunpack.c.0.s8 %v1284
        %v1286 = vlaneseq
        %v1287 = vshrl.u32 %v1286, 7
        %v1288 = vsub.s32 %v1285, %v1287
        %v1289 = vrot.slane %v1275, %v1288
        %v1290 = vcombine.low %v1234, %v1250
        %v1291 = vcombine.high %v1234, %v1250
        %v1293 = vunpack.c.l.s4 1934713408
        %v1294 = vunpack.c.0.s8 %v1293
        %v1295 = vlaneseq
        %v1296 = vshrl.u32 %v1295, 7
        %v1297 = vsub.s32 %v1294, %v1296
        %v1298 = vrot.slane %v1290, %v1297
        %v1300 = vunpack.c.l.s4 1934713408
        %v1301 = vunpack.c.0.s8 %v1300
        %v1302 = vlaneseq
        %v1303 = vshrl.u32 %v1302, 7
        %v1304 = vsub.s32 %v1301, %v1303
        %v1305 = vrot.slane %v1291, %v1304
        %v1306 = vcombine.low %v1241, %v1257
        %v1307 = vcombine.high %v1241, %v1257
        %v1309 = vunpack.c.l.s4 1934713408
        %v1310 = vunpack.c.0.s8 %v1309
        %v1311 = vlaneseq
        %v1312 = vshrl.u32 %v1311, 7
        %v1313 = vsub.s32 %v1310, %v1312
        %v1314 = vrot.slane %v1306, %v1313
        %v1316 = vunpack.c.l.s4 1934713408
        %v1317 = vunpack.c.0.s8 %v1316
        %v1318 = vlaneseq
        %v1319 = vshrl.u32 %v1318, 7
        %v1320 = vsub.s32 %v1317, %v1319
        %v1321 = vrot.slane %v1307, %v1320
        %v1322 = vcombine.low %v1266, %v1298
        %v1323 = vcombine.high %v1266, %v1298
        %v1324 = vcombine.low %v1273, %v1305
        %v1325 = vcombine.high %v1273, %v1305
        %v1326 = vcombine.low %v1282, %v1314
        %v1327 = vcombine.high %v1282, %v1314
        %v1328 = vcombine.low %v1289, %v1321
        %v1329 = vcombine.high %v1289, %v1321
        %v1330 = vcombine.low %v348, %v370
        %v1331 = vcombine.high %v348, %v370
        %v1333 = vunpack.c.l.s4 1983009808
        %v1334 = vunpack.c.0.s8 %v1333
        %v1335 = vlaneseq
        %v1336 = vshrl.u32 %v1335, 7
        %v1337 = vsub.s32 %v1334, %v1336
        %v1338 = vrot.slane %v1330, %v1337
        %v1340 = vunpack.c.l.s4 1983009808
        %v1341 = vunpack.c.0.s8 %v1340
        %v1342 = vlaneseq
        %v1343 = vshrl.u32 %v1342, 7
        %v1344 = vsub.s32 %v1341, %v1343
        %v1345 = vrot.slane %v1331, %v1344
        %v1346 = vcombine.low %v359, %v381
        %v1347 = vcombine.high %v359, %v381
        %v1349 = vunpack.c.l.s4 1983009808
        %v1350 = vunpack.c.0.s8 %v1349
        %v1351 = vlaneseq
        %v1352 = vshrl.u32 %v1351, 7
        %v1353 = vsub.s32 %v1350, %v1352
        %v1354 = vrot.slane %v1346, %v1353
        %v1356 = vunpack.c.l.s4 1983009808
        %v1357 = vunpack.c.0.s8 %v1356
        %v1358 = vlaneseq
        %v1359 = vshrl.u32 %v1358, 7
        %v1360 = vsub.s32 %v1357, %v1359
        %v1361 = vrot.slane %v1347, %v1360
        %v1362 = vcombine.low %v392, %v414
        %v1363 = vcombine.high %v392, %v414
        %v1365 = vunpack.c.l.s4 1983009808
        %v1366 = vunpack.c.0.s8 %v1365
        %v1367 = vlaneseq
        %v1368 = vshrl.u32 %v1367, 7
        %v1369 = vsub.s32 %v1366, %v1368
        %v1370 = vrot.slane %v1362, %v1369
        %v1372 = vunpack.c.l.s4 1983009808
        %v1373 = vunpack.c.0.s8 %v1372
        %v1374 = vlaneseq
        %v1375 = vshrl.u32 %v1374, 7
        %v1376 = vsub.s32 %v1373, %v1375
        %v1377 = vrot.slane %v1363, %v1376
        %v1378 = vcombine.low %v403, %v425
        %v1379 = vcombine.high %v403, %v425
        %v1381 = vunpack.c.l.s4 1983009808
        %v1382 = vunpack.c.0.s8 %v1381
        %v1383 = vlaneseq
        %v1384 = vshrl.u32 %v1383, 7
        %v1385 = vsub.s32 %v1382, %v1384
        %v1386 = vrot.slane %v1378, %v1385
        %v1388 = vunpack.c.l.s4 1983009808
        %v1389 = vunpack.c.0.s8 %v1388
        %v1390 = vlaneseq
        %v1391 = vshrl.u32 %v1390, 7
        %v1392 = vsub.s32 %v1389, %v1391
        %v1393 = vrot.slane %v1379, %v1392
        %v1394 = vcombine.low %v1338, %v1354
        %v1395 = vcombine.high %v1338, %v1354
        %v1397 = vunpack.c.l.s4 1934713408
        %v1398 = vunpack.c.0.s8 %v1397
        %v1399 = vlaneseq
        %v1400 = vshrl.u32 %v1399, 7
        %v1401 = vsub.s32 %v1398, %v1400
        %v1402 = vrot.slane %v1394, %v1401
        %v1404 = vunpack.c.l.s4 1934713408
        %v1405 = vunpack.c.0.s8 %v1404
        %v1406 = vlaneseq
        %v1407 = vshrl.u32 %v1406, 7
        %v1408 = vsub.s32 %v1405, %v1407
        %v1409 = vrot.slane %v1395, %v1408
        %v1410 = vcombine.low %v1345, %v1361
        %v1411 = vcombine.high %v1345, %v1361
        %v1413 = vunpack.c.l.s4 1934713408
        %v1414 = vunpack.c.0.s8 %v1413
        %v1415 = vlaneseq
        %v1416 = vshrl.u32 %v1415, 7
        %v1417 = vsub.s32 %v1414, %v1416
        %v1418 = vrot.slane %v1410, %v1417
        %v1420 = vunpack.c.l.s4 1934713408
        %v1421 = vunpack.c.0.s8 %v1420
        %v1422 = vlaneseq
        %v1423 = vshrl.u32 %v1422, 7
        %v1424 = vsub.s32 %v1421, %v1423
        %v1425 = vrot.slane %v1411, %v1424
        %v1426 = vcombine.low %v1370, %v1386
        %v1427 = vcombine.high %v1370, %v1386
        %v1429 = vunpack.c.l.s4 1934713408
        %v1430 = vunpack.c.0.s8 %v1429
        %v1431 = vlaneseq
        %v1432 = vshrl.u32 %v1431, 7
        %v1433 = vsub.s32 %v1430, %v1432
        %v1434 = vrot.slane %v1426, %v1433
        %v1436 = vunpack.c.l.s4 1934713408
        %v1437 = vunpack.c.0.s8 %v1436
        %v1438 = vlaneseq
        %v1439 = vshrl.u32 %v1438, 7
        %v1440 = vsub.s32 %v1437, %v1439
        %v1441 = vrot.slane %v1427, %v1440
        %v1442 = vcombine.low %v1377, %v1393
        %v1443 = vcombine.high %v1377, %v1393
        %v1445 = vunpack.c.l.s4 1934713408
        %v1446 = vunpack.c.0.s8 %v1445
        %v1447 = vlaneseq
        %v1448 = vshrl.u32 %v1447, 7
        %v1449 = vsub.s32 %v1446, %v1448
        %v1450 = vrot.slane %v1442, %v1449
        %v1452 = vunpack.c.l.s4 1934713408
        %v1453 = vunpack.c.0.s8 %v1452
        %v1454 = vlaneseq
        %v1455 = vshrl.u32 %v1454, 7
        %v1456 = vsub.s32 %v1453, %v1455
        %v1457 = vrot.slane %v1443, %v1456
        %v1458 = vcombine.low %v1402, %v1434
        %v1459 = vcombine.high %v1402, %v1434
        %v1460 = vcombine.low %v1409, %v1441
        %v1461 = vcombine.high %v1409, %v1441
        %v1462 = vcombine.low %v1418, %v1450
        %v1463 = vcombine.high %v1418, %v1450
        %v1464 = vcombine.low %v1425, %v1457
        %v1465 = vcombine.high %v1425, %v1457
        %v1466 = vcombine.low %v436, %v458
        %v1467 = vcombine.high %v436, %v458
        %v1469 = vunpack.c.l.s4 1983009808
        %v1470 = vunpack.c.0.s8 %v1469
        %v1471 = vlaneseq
        %v1472 = vshrl.u32 %v1471, 7
        %v1473 = vsub.s32 %v1470, %v1472
        %v1474 = vrot.slane %v1466, %v1473
        %v1476 = vunpack.c.l.s4 1983009808
        %v1477 = vunpack.c.0.s8 %v1476
        %v1478 = vlaneseq
        %v1479 = vshrl.u32 %v1478, 7
        %v1480 = vsub.s32 %v1477, %v1479
        %v1481 = vrot.slane %v1467, %v1480
        %v1482 = vcombine.low %v447, %v469
        %v1483 = vcombine.high %v447, %v469
        %v1485 = vunpack.c.l.s4 1983009808
        %v1486 = vunpack.c.0.s8 %v1485
        %v1487 = vlaneseq
        %v1488 = vshrl.u32 %v1487, 7
        %v1489 = vsub.s32 %v1486, %v1488
        %v1490 = vrot.slane %v1482, %v1489
        %v1492 = vunpack.c.l.s4 1983009808
        %v1493 = vunpack.c.0.s8 %v1492
        %v1494 = vlaneseq
        %v1495 = vshrl.u32 %v1494, 7
        %v1496 = vsub.s32 %v1493, %v1495
        %v1497 = vrot.slane %v1483, %v1496
        %v1498 = vcombine.low %v480, %v502
        %v1499 = vcombine.high %v480, %v502
        %v1501 = vunpack.c.l.s4 1983009808
        %v1502 = vunpack.c.0.s8 %v1501
        %v1503 = vlaneseq
        %v1504 = vshrl.u32 %v1503, 7
        %v1505 = vsub.s32 %v1502, %v1504
        %v1506 = vrot.slane %v1498, %v1505
        %v1508 = vunpack.c.l.s4 1983009808
        %v1509 = vunpack.c.0.s8 %v1508
        %v1510 = vlaneseq
        %v1511 = vshrl.u32 %v1510, 7
        %v1512 = vsub.s32 %v1509, %v1511
        %v1513 = vrot.slane %v1499, %v1512
        %v1514 = vcombine.low %v491, %v513
        %v1515 = vcombine.high %v491, %v513
        %v1517 = vunpack.c.l.s4 1983009808
        %v1518 = vunpack.c.0.s8 %v1517
        %v1519 = vlaneseq
        %v1520 = vshrl.u32 %v1519, 7
        %v1521 = vsub.s32 %v1518, %v1520
        %v1522 = vrot.slane %v1514, %v1521
        %v1524 = vunpack.c.l.s4 1983009808
        %v1525 = vunpack.c.0.s8 %v1524
        %v1526 = vlaneseq
        %v1527 = vshrl.u32 %v1526, 7
        %v1528 = vsub.s32 %v1525, %v1527
        %v1529 = vrot.slane %v1515, %v1528
        %v1530 = vcombine.low %v1474, %v1490
        %v1531 = vcombine.high %v1474, %v1490
        %v1533 = vunpack.c.l.s4 1934713408
        %v1534 = vunpack.c.0.s8 %v1533
        %v1535 = vlaneseq
        %v1536 = vshrl.u32 %v1535, 7
        %v1537 = vsub.s32 %v1534, %v1536
        %v1538 = vrot.slane %v1530, %v1537
        %v1540 = vunpack.c.l.s4 1934713408
        %v1541 = vunpack.c.0.s8 %v1540
        %v1542 = vlaneseq
        %v1543 = vshrl.u32 %v1542, 7
        %v1544 = vsub.s32 %v1541, %v1543
        %v1545 = vrot.slane %v1531, %v1544
        %v1546 = vcombine.low %v1481, %v1497
        %v1547 = vcombine.high %v1481, %v1497
        %v1549 = vunpack.c.l.s4 1934713408
        %v1550 = vunpack.c.0.s8 %v1549
        %v1551 = vlaneseq
        %v1552 = vshrl.u32 %v1551, 7
        %v1553 = vsub.s32 %v1550, %v1552
        %v1554 = vrot.slane %v1546, %v1553
        %v1556 = vunpack.c.l.s4 1934713408
        %v1557 = vunpack.c.0.s8 %v1556
        %v1558 = vlaneseq
        %v1559 = vshrl.u32 %v1558, 7
        %v1560 = vsub.s32 %v1557, %v1559
        %v1561 = vrot.slane %v1547, %v1560
        %v1562 = vcombine.low %v1506, %v1522
        %v1563 = vcombine.high %v1506, %v1522
        %v1565 = vunpack.c.l.s4 1934713408
        %v1566 = vunpack.c.0.s8 %v1565
        %v1567 = vlaneseq
        %v1568 = vshrl.u32 %v1567, 7
        %v1569 = vsub.s32 %v1566, %v1568
        %v1570 = vrot.slane %v1562, %v1569
        %v1572 = vunpack.c.l.s4 1934713408
        %v1573 = vunpack.c.0.s8 %v1572
        %v1574 = vlaneseq
        %v1575 = vshrl.u32 %v1574, 7
        %v1576 = vsub.s32 %v1573, %v1575
        %v1577 = vrot.slane %v1563, %v1576
        %v1578 = vcombine.low %v1513, %v1529
        %v1579 = vcombine.high %v1513, %v1529
        %v1581 = vunpack.c.l.s4 1934713408
        %v1582 = vunpack.c.0.s8 %v1581
        %v1583 = vlaneseq
        %v1584 = vshrl.u32 %v1583, 7
        %v1585 = vsub.s32 %v1582, %v1584
        %v1586 = vrot.slane %v1578, %v1585
        %v1588 = vunpack.c.l.s4 1934713408
        %v1589 = vunpack.c.0.s8 %v1588
        %v1590 = vlaneseq
        %v1591 = vshrl.u32 %v1590, 7
        %v1592 = vsub.s32 %v1589, %v1591
        %v1593 = vrot.slane %v1579, %v1592
        %v1594 = vcombine.low %v1538, %v1570
        %v1595 = vcombine.high %v1538, %v1570
        %v1596 = vcombine.low %v1545, %v1577
        %v1597 = vcombine.high %v1545, %v1577
        %v1598 = vcombine.low %v1554, %v1586
        %v1599 = vcombine.high %v1554, %v1586
        %v1600 = vcombine.low %v1561, %v1593
        %v1601 = vcombine.high %v1561, %v1593
        %1606 = vrot.lane.b32.xlu0 %v643, 2
        %v1607 = vpop.permute.xlu0 %1606
        %1608 = vrot.lane.b32.xlu0 %v779, 2
        %v1609 = vpop.permute.xlu0 %1608
        %1610 = vrot.lane.b32.xlu0 %v1187, 2
        %v1611 = vpop.permute.xlu0 %1610
        %1612 = vrot.lane.b32.xlu0 %v1323, 2
        %v1613 = vpop.permute.xlu0 %1612
        %1622 = vrot.lane.b32.xlu0 %v644, 4
        %v1623 = vpop.permute.xlu0 %1622
        %1624 = vrot.lane.b32.xlu0 %v780, 4
        %v1625 = vpop.permute.xlu0 %1624
        %1626 = vrot.lane.b32.xlu0 %v1188, 4
        %v1627 = vpop.permute.xlu0 %1626
        %1628 = vrot.lane.b32.xlu0 %v1324, 4
        %v1629 = vpop.permute.xlu0 %1628
        %1638 = vrot.lane.b32.xlu0 %v645, 6
        %v1639 = vpop.permute.xlu0 %1638
        %1640 = vrot.lane.b32.xlu0 %v781, 6
        %v1641 = vpop.permute.xlu0 %1640
        %1642 = vrot.lane.b32.xlu0 %v1189, 6
        %v1643 = vpop.permute.xlu0 %1642
        %1644 = vrot.lane.b32.xlu0 %v1325, 6
        %v1645 = vpop.permute.xlu0 %1644
        %1654 = vrot.lane.b32.xlu0 %v646, 8
        %v1655 = vpop.permute.xlu0 %1654
        %1656 = vrot.lane.b32.xlu0 %v782, 8
        %v1657 = vpop.permute.xlu0 %1656
        %1658 = vrot.lane.b32.xlu0 %v1190, 8
        %v1659 = vpop.permute.xlu0 %1658
        %1660 = vrot.lane.b32.xlu0 %v1326, 8
        %v1661 = vpop.permute.xlu0 %1660
        %1670 = vrot.lane.b32.xlu0 %v647, 10
        %v1671 = vpop.permute.xlu0 %1670
        %1672 = vrot.lane.b32.xlu0 %v783, 10
        %v1673 = vpop.permute.xlu0 %1672
        %1674 = vrot.lane.b32.xlu0 %v1191, 10
        %v1675 = vpop.permute.xlu0 %1674
        %1676 = vrot.lane.b32.xlu0 %v1327, 10
        %v1677 = vpop.permute.xlu0 %1676
        %1686 = vrot.lane.b32.xlu0 %v648, 12
        %v1687 = vpop.permute.xlu0 %1686
        %1688 = vrot.lane.b32.xlu0 %v784, 12
        %v1689 = vpop.permute.xlu0 %1688
        %1690 = vrot.lane.b32.xlu0 %v1192, 12
        %v1691 = vpop.permute.xlu0 %1690
        %1692 = vrot.lane.b32.xlu0 %v1328, 12
        %v1693 = vpop.permute.xlu0 %1692
        %1702 = vrot.lane.b32.xlu0 %v649, 14
        %v1703 = vpop.permute.xlu0 %1702
        %1704 = vrot.lane.b32.xlu0 %v785, 14
        %v1705 = vpop.permute.xlu0 %1704
        %1706 = vrot.lane.b32.xlu0 %v1193, 14
        %v1707 = vpop.permute.xlu0 %1706
        %1708 = vrot.lane.b32.xlu0 %v1329, 14
        %v1709 = vpop.permute.xlu0 %1708
        %1718 = vrot.lane.b32.xlu0 %v914, 16
        %v1719 = vpop.permute.xlu0 %1718
        %1720 = vrot.lane.b32.xlu0 %v1050, 16
        %v1721 = vpop.permute.xlu0 %1720
        %1722 = vrot.lane.b32.xlu0 %v1458, 16
        %v1723 = vpop.permute.xlu0 %1722
        %1724 = vrot.lane.b32.xlu0 %v1594, 16
        %v1725 = vpop.permute.xlu0 %1724
        %1734 = vrot.lane.b32.xlu0 %v915, 18
        %v1735 = vpop.permute.xlu0 %1734
        %1736 = vrot.lane.b32.xlu0 %v1051, 18
        %v1737 = vpop.permute.xlu0 %1736
        %1738 = vrot.lane.b32.xlu0 %v1459, 18
        %v1739 = vpop.permute.xlu0 %1738
        %1740 = vrot.lane.b32.xlu0 %v1595, 18
        %v1741 = vpop.permute.xlu0 %1740
        %1750 = vrot.lane.b32.xlu0 %v916, 20
        %v1751 = vpop.permute.xlu0 %1750
        %1752 = vrot.lane.b32.xlu0 %v1052, 20
        %v1753 = vpop.permute.xlu0 %1752
        %1754 = vrot.lane.b32.xlu0 %v1460, 20
        %v1755 = vpop.permute.xlu0 %1754
        %1756 = vrot.lane.b32.xlu0 %v1596, 20
        %v1757 = vpop.permute.xlu0 %1756
        %1766 = vrot.lane.b32.xlu0 %v917, 22
        %v1767 = vpop.permute.xlu0 %1766
        %1768 = vrot.lane.b32.xlu0 %v1053, 22
        %v1769 = vpop.permute.xlu0 %1768
        %1770 = vrot.lane.b32.xlu0 %v1461, 22
        %v1771 = vpop.permute.xlu0 %1770
        %1772 = vrot.lane.b32.xlu0 %v1597, 22
        %v1773 = vpop.permute.xlu0 %1772
        %1782 = vrot.lane.b32.xlu0 %v918, 24
        %v1783 = vpop.permute.xlu0 %1782
        %1784 = vrot.lane.b32.xlu0 %v1054, 24
        %v1785 = vpop.permute.xlu0 %1784
        %1786 = vrot.lane.b32.xlu0 %v1462, 24
        %v1787 = vpop.permute.xlu0 %1786
        %1788 = vrot.lane.b32.xlu0 %v1598, 24
        %v1789 = vpop.permute.xlu0 %1788
        %1798 = vrot.lane.b32.xlu0 %v919, 26
        %v1799 = vpop.permute.xlu0 %1798
        %1800 = vrot.lane.b32.xlu0 %v1055, 26
        %v1801 = vpop.permute.xlu0 %1800
        %1802 = vrot.lane.b32.xlu0 %v1463, 26
        %v1803 = vpop.permute.xlu0 %1802
        %1804 = vrot.lane.b32.xlu0 %v1599, 26
        %v1805 = vpop.permute.xlu0 %1804
        %1814 = vrot.lane.b32.xlu0 %v920, 28
        %v1815 = vpop.permute.xlu0 %1814
        %1816 = vrot.lane.b32.xlu0 %v1056, 28
        %v1817 = vpop.permute.xlu0 %1816
        %1818 = vrot.lane.b32.xlu0 %v1464, 28
        %v1819 = vpop.permute.xlu0 %1818
        %1820 = vrot.lane.b32.xlu0 %v1600, 28
        %v1821 = vpop.permute.xlu0 %1820
        %1830 = vrot.lane.b32.xlu0 %v921, 30
        %v1831 = vpop.permute.xlu0 %1830
        %1832 = vrot.lane.b32.xlu0 %v1057, 30
        %v1833 = vpop.permute.xlu0 %1832
        %1834 = vrot.lane.b32.xlu0 %v1465, 30
        %v1835 = vpop.permute.xlu0 %1834
        %1836 = vrot.lane.b32.xlu0 %v1601, 30
        %v1837 = vpop.permute.xlu0 %1836
        %vm1842 = vcmask 15360
        %v1843 = vsel %vm1842, %v642, %v1607
        %v1844 = vsel %vm1842, %v778, %v1609
        %v1845 = vsel %vm1842, %v1186, %v1611
        %v1846 = vsel %vm1842, %v1322, %v1613
        %vm1847 = vcmask 31744
        %v1848 = vsel %vm1847, %v1843, %v1623
        %v1849 = vsel %vm1847, %v1844, %v1625
        %v1850 = vsel %vm1847, %v1845, %v1627
        %v1851 = vsel %vm1847, %v1846, %v1629
        %vm1852 = vcmask 48128
        %v1853 = vsel %vm1852, %v1848, %v1639
        %v1854 = vsel %vm1852, %v1849, %v1641
        %v1855 = vsel %vm1852, %v1850, %v1643
        %v1856 = vsel %vm1852, %v1851, %v1645
        %vm1857 = vcmask 64512
        %v1858 = vsel %vm1857, %v1853, %v1655
        %v1859 = vsel %vm1857, %v1854, %v1657
        %v1860 = vsel %vm1857, %v1855, %v1659
        %v1861 = vsel %vm1857, %v1856, %v1661
        %vm1862 = vcmask 80896
        %v1863 = vsel %vm1862, %v1858, %v1671
        %v1864 = vsel %vm1862, %v1859, %v1673
        %v1865 = vsel %vm1862, %v1860, %v1675
        %v1866 = vsel %vm1862, %v1861, %v1677
        %vm1867 = vcmask 97280
        %v1868 = vsel %vm1867, %v1863, %v1687
        %v1869 = vsel %vm1867, %v1864, %v1689
        %v1870 = vsel %vm1867, %v1865, %v1691
        %v1871 = vsel %vm1867, %v1866, %v1693
        %vm1872 = vcmask 113664
        %v1873 = vsel %vm1872, %v1868, %v1703
        %v1874 = vsel %vm1872, %v1869, %v1705
        %v1875 = vsel %vm1872, %v1870, %v1707
        %v1876 = vsel %vm1872, %v1871, %v1709
        %vm1877 = vcmask 130048
        %v1878 = vsel %vm1877, %v1873, %v1719
        %v1879 = vsel %vm1877, %v1874, %v1721
        %v1880 = vsel %vm1877, %v1875, %v1723
        %v1881 = vsel %vm1877, %v1876, %v1725
        %vm1882 = vcmask 146432
        %v1883 = vsel %vm1882, %v1878, %v1735
        %v1884 = vsel %vm1882, %v1879, %v1737
        %v1885 = vsel %vm1882, %v1880, %v1739
        %v1886 = vsel %vm1882, %v1881, %v1741
        %vm1887 = vcmask 162816
        %v1888 = vsel %vm1887, %v1883, %v1751
        %v1889 = vsel %vm1887, %v1884, %v1753
        %v1890 = vsel %vm1887, %v1885, %v1755
        %v1891 = vsel %vm1887, %v1886, %v1757
        %vm1892 = vcmask 179200
        %v1893 = vsel %vm1892, %v1888, %v1767
        %v1894 = vsel %vm1892, %v1889, %v1769
        %v1895 = vsel %vm1892, %v1890, %v1771
        %v1896 = vsel %vm1892, %v1891, %v1773
        %vm1897 = vcmask 195584
        %v1898 = vsel %vm1897, %v1893, %v1783
        %v1899 = vsel %vm1897, %v1894, %v1785
        %v1900 = vsel %vm1897, %v1895, %v1787
        %v1901 = vsel %vm1897, %v1896, %v1789
        %vm1902 = vcmask 211968
        %v1903 = vsel %vm1902, %v1898, %v1799
        %v1904 = vsel %vm1902, %v1899, %v1801
        %v1905 = vsel %vm1902, %v1900, %v1803
        %v1906 = vsel %vm1902, %v1901, %v1805
        %vm1907 = vcmask 228352
        %v1908 = vsel %vm1907, %v1903, %v1815
        %v1909 = vsel %vm1907, %v1904, %v1817
        %v1910 = vsel %vm1907, %v1905, %v1819
        %v1911 = vsel %vm1907, %v1906, %v1821
        %vm1912 = vcmask 244736
        %v1913 = vsel %vm1912, %v1908, %v1831
        %v1914 = vsel %vm1912, %v1909, %v1833
        %v1915 = vsel %vm1912, %v1910, %v1835
        %v1916 = vsel %vm1912, %v1911, %v1837
        %1921 = vrot.lane.b32.xlu0 %v1913, 32
        %v1922 = vpop.permute.xlu0 %1921
        %1923 = vrot.lane.b32.xlu0 %v1914, 32
        %v1924 = vpop.permute.xlu0 %1923
        %1925 = vrot.lane.b32.xlu0 %v1915, 32
        %v1926 = vpop.permute.xlu0 %1925
        %1927 = vrot.lane.b32.xlu0 %v1916, 32
        %v1928 = vpop.permute.xlu0 %1927
        %vm1933 = vcmask 261120
        %v1934 = vsel %vm1933, %v1913, %v1922
        %v1935 = vsel %vm1933, %v1914, %v1924
        %v1936 = vsel %vm1933, %v1915, %v1926
        %v1937 = vsel %vm1933, %v1916, %v1928
        %vm1938 = vcmask 523264
        %1939 = vst.msk [vmem:[%s153] sm:$0xff] %vm1938, %v1934
        %1940 = vst.msk [vmem:[%s153 + $0x8] sm:$0xff] %vm1938, %v1935
        %1941 = vst.msk [vmem:[%s153 + $0x10] sm:$0xff] %vm1938, %v1936
        %1942 = vst.msk [vmem:[%s153 + $0x18] sm:$0xff] %vm1938, %v1937
        %s1943 = sand.u32 %s68, 1
        %s1944 = scalar_lea.sflag [#allocation4], %s1943
        %s1945 = sand.u32 %s68, 1
        %s1946 = smul.addr %s1945, 32
        %s1947 = scalar_lea.vmem [#allocation5], %s1946
        // Predicated region
        $region29: #{tpu_custom_call.1} parent=23 // pred_check
          %p1948 = pneg %p78
        $region30: #{tpu_custom_call.1} parent=23 // pred_check_branch
          %1950 = sbr.rel (%p1948) target = $region32
        $region31: #{tpu_custom_call.1} parent=23 // pred_region
          %s1951 = smul.u32 2, %s22
          %s1952 = smul.u32 2, %s23
          %s1954 = ssub.s32 512, 512
          %1955 = vsyncadd %s1944, %s1954
          %s1956 = smul.addr %s1951, 2
          %s1957 = sadd.s32 %s1952, %s1956
          %s1958 = smul.addr %s1957, 128
          %s1959 = scalar_lea.hbm %s1, %s1958
          %s1960 = sshll.u32 %s1947, 4
          %s1961 = int_to_ptr.vmem [resolvable:$true] %s1960
          %1966 = dma.vmem_to_hbm [thread:$0]  %s1961, 512, %s1959, %s1944, 128, 128, 8
        $region32: #{tpu_custom_call.1} parent=23 // pred_fallthru
          _
      $region24: #{tpu_custom_call.1} parent=5 // pred_fallthru
        _
      %p1967 = scmp.le.s32.totalorder 2, %s13
      // Predicated region
      $region33: #{tpu_custom_call.1} parent=5 // pred_check
        %p1968 = pneg %p1967
      $region34: #{tpu_custom_call.1} parent=5 // pred_check_branch
        %1970 = sbr.rel (%p1968) target = $region36
      $region35: #{tpu_custom_call.1} parent=5 // pred_region
        %s1971 = ssub.s32 %s13, 2
        // Predicated region
        $region37: #{tpu_custom_call.1} parent=35 // pred_check
          %p1972 = pneg %p84
        $region38: #{tpu_custom_call.1} parent=35 // pred_check_branch
          %1974 = sbr.rel (%p1972) target = $region40
        $region39: #{tpu_custom_call.1} parent=35 // pred_region
          %s1975 = sand.u32 %s69, 1
          %s1976 = scalar_lea.sflag [#allocation4], %s1975
          %s1977 = sand.u32 %s69, 1
          %s1978 = smul.addr %s1977, 32
          %s1979 = scalar_lea.vmem [#allocation5], %s1978
          %1980 = dma.done %s1976, 512
        $region40: #{tpu_custom_call.1} parent=35 // pred_fallthru
          _
      $region36: #{tpu_custom_call.1} parent=5 // pred_fallthru
        _
    $region6: #{tpu_custom_call.1} parent=1 // loop_footer
      %s17 = sadd.s32 1, %s13
    $region7: #{tpu_custom_call.1} parent=1 // loop_footer_branch
      %12 = sbr.rel target = $region3
    $region8: #{tpu_custom_call.1} parent=1 // loop_exit
      _
    %1981 = vsyncpa [#allocation3], 1
    %s1982 = scalar_lea.sflag [#allocation3], 1
    %1983 = vsyncpa %s1982, 1
    %1984 = vsyncpa [#allocation4], 1
    %s1985 = scalar_lea.sflag [#allocation4], 1
    %1986 = vsyncpa %s1985, 1

</llo_original>
